<compile_context>
chip_gen: v6e
topology: v6e:2x2x1
jax: 0.10.0
libtpu: 0.0.40
codegen_flags: <defaults>
</compile_context>

<pallas_src>
import functools
import math

import jax
import jax.numpy as jnp
from jax.experimental import pallas as pl
from jax.experimental.pallas import tpu as pltpu


def _mlp_kernel(x_ref, g_ref, b_ref, w_ref, bias_ref, o_ref, *, eps):
    # x_ref: (Tm, D)   g_ref/b_ref: (1, D)   w_ref: (D, Cp)   bias_ref: (1, Cp)
    # o_ref: (Tm, Cp)
    x = x_ref[...].astype(jnp.float32)

    # ---- LayerNorm over the last dim (PyTorch: biased variance, eps=1e-5) ----
    mean = jnp.mean(x, axis=-1, keepdims=True)
    xc = x - mean
    var = jnp.mean(xc * xc, axis=-1, keepdims=True)
    inv = jax.lax.rsqrt(var + eps)
    y = xc * inv * g_ref[...].astype(jnp.float32) + b_ref[...].astype(jnp.float32)

    # ---- Linear: (Tm, D) @ (D, Cp) + bias; feed the MXU in W's native dtype ----
    logits = jnp.dot(
        y.astype(w_ref.dtype), w_ref[...], preferred_element_type=jnp.float32
    ) + bias_ref[...].astype(jnp.float32)

    # ---- Softmax over the last dim (numerically stable) ----
    # Padded columns carry bias = -1e30, so exp(...) == 0 for them.
    m = jnp.max(logits, axis=-1, keepdims=True)
    e = jnp.exp(logits - m)
    s = jnp.sum(e, axis=-1, keepdims=True)
    r = pl.reciprocal(s, approx=True)       # EUP slot
    r = r * (2.0 - s * r)                   # one Newton step on (Tm, 1): ~f32 exact
    o_ref[...] = (e * r).astype(o_ref.dtype)


def _round_up(x, m):
    return ((x + m - 1) // m) * m


def _sublane(itemsize):
    return {4: 8, 2: 16, 1: 32}.get(itemsize, 8)


def mlp_forward(x, gamma, beta, w, bias, *, eps=1e-5):
    """x: (..., D), gamma/beta: (D,), w: (D, C), bias: (C,) -> (..., C)."""
    *lead, D = x.shape
    C = w.shape[-1]
    R = math.prod(lead) if lead else 1

    x_item = jnp.dtype(x.dtype).itemsize
    w_item = jnp.dtype(w.dtype).itemsize
    out_item = x_item
    sub = _sublane(x_item)

    # ---- Lane-dense output: pad classes to a multiple of 128 lanes. ----
    Cp = _round_up(C, 128)
    if Cp != C:
        w_p = jnp.pad(w, ((0, 0), (0, Cp - C)))
        bias_p = jnp.pad(bias, (0, Cp - C), constant_values=-1e30)
    else:
        w_p, bias_p = w, bias

    x2 = x.reshape(R, D)
    g2 = gamma.reshape(1, D)
    b2 = beta.reshape(1, D)
    bias2 = bias_p.reshape(1, Cp)

    # ---- Row-tile sizing by bytes, capped by a cross-generation VMEM budget. ----
    TARGET_X_TILE_BYTES = 2 << 20          # ~2 MiB of x per pipeline buffer
    VMEM_BUDGET = 24 << 20                 # conservative for v5e/v6e/v7x
    fixed_bytes = (
        2 * D * Cp * w_item                # weight block (counted double-buffered)
        + 2 * (2 * D * x_item + Cp * x_item)  # gamma/beta/bias blocks
        + (256 << 10)                      # slack for internal scratch
    )
    per_row_bytes = 2 * D * x_item + 2 * Cp * out_item  # double-buffered x + out
    tm_by_target = max(TARGET_X_TILE_BYTES // max(D * x_item, 1), sub)
    tm_by_vmem = max((VMEM_BUDGET - fixed_bytes) // per_row_bytes, sub)
    tm_cap = min(tm_by_target, tm_by_vmem, 8192)
    tm_cap = max(sub, (tm_cap // sub) * sub)
    Tm = min(tm_cap, _round_up(R, sub))

    grid = (pl.cdiv(R, Tm),)

    vmem_need = (
        2 * Tm * D * x_item + 2 * Tm * Cp * out_item + fixed_bytes + (1 << 20)
    )
    vmem_limit = int(min(max(vmem_need, 16 << 20), 48 << 20))

    cost = pl.CostEstimate(
        flops=2 * R * D * Cp + 10 * R * D + 5 * R * Cp,
        transcendentals=R * Cp + 2 * R,
        bytes_accessed=(
            R * D * x_item + R * Cp * out_item + D * Cp * w_item
            + (2 * D + Cp) * 4
        ),
    )

    kernel = functools.partial(_mlp_kernel, eps=eps)

    out_padded = pl.pallas_call(
        kernel,
        out_shape=jax.ShapeDtypeStruct((R, Cp), x.dtype),
        grid=grid,
        in_specs=[
            pl.BlockSpec((Tm, D), lambda i: (i, 0)),   # x row tile
            pl.BlockSpec((1, D), lambda i: (0, 0)),    # LayerNorm gamma
            pl.BlockSpec((1, D), lambda i: (0, 0)),    # LayerNorm beta
            pl.BlockSpec((D, Cp), lambda i: (0, 0)),   # Linear weight (lane-padded)
            pl.BlockSpec((1, Cp), lambda i: (0, 0)),   # Linear bias (lane-padded)
        ],
        out_specs=pl.BlockSpec((Tm, Cp), lambda i: (i, 0)),
        compiler_params=pltpu.CompilerParams(
            dimension_semantics=("parallel",),
            vmem_limit_bytes=vmem_limit,
        ),
        cost_estimate=cost,
    )(x2, g2, b2, w_p, bias2)

    return out_padded[:, :C].reshape(*lead, C)


def mlp_reference(x, gamma, beta, w, bias, eps=1e-5):
    """Pure-JAX reference matching torch: LayerNorm -> Linear -> Softmax."""
    mean = jnp.mean(x, axis=-1, keepdims=True)
    var = jnp.mean((x - mean) ** 2, axis=-1, keepdims=True)
    xn = (x - mean) * jax.lax.rsqrt(var + eps)
    y = xn * gamma + beta
    logits = jnp.einsum("...d,dc->...c", y, w) + bias
    return jax.nn.softmax(logits, axis=-1)


if __name__ == "__main__":
    key = jax.random.PRNGKey(0)
    kx, kg, kb, kw, kbi = jax.random.split(key, 5)

    # Small shapes consistent with the module: batch=2, seq=8, dim=32, classes=16
    B, S, D, C = 2, 8, 32, 16
    x = jax.random.normal(kx, (B, S, D), dtype=jnp.float32)
    gamma = 1.0 + 0.1 * jax.random.normal(kg, (D,), dtype=jnp.float32)
    beta = 0.1 * jax.random.normal(kb, (D,), dtype=jnp.float32)
    w = jax.random.normal(kw, (D, C), dtype=jnp.float32) / jnp.sqrt(D)
    bias = 0.1 * jax.random.normal(kbi, (C,), dtype=jnp.float32)

    out = mlp_forward(x, gamma, beta, w, bias)
    out = jax.block_until_ready(out)

    ref = jax.block_until_ready(mlp_reference(x, gamma, beta, w, bias))
    assert out.shape == (B, S, C)
    assert jnp.allclose(out, ref, atol=1e-4, rtol=1e-4), "mismatch vs reference"
    # Softmax rows should sum to 1.
    assert jnp.allclose(jnp.sum(out, axis=-1), 1.0, atol=1e-4)

    print("KERNEL_OK")
</pallas_src>

<mosaic_0001>
module attributes {stable_mosaic.version = 11 : i64} {
  func.func @_mlp_kernel(%arg0: i32, %arg1: memref<16x32xf32, #tpu.memory_space<vmem>>, %arg2: memref<1x32xf32, #tpu.memory_space<vmem>>, %arg3: memref<1x32xf32, #tpu.memory_space<vmem>>, %arg4: memref<32x128xf32, #tpu.memory_space<vmem>>, %arg5: memref<1x128xf32, #tpu.memory_space<vmem>>, %arg6: memref<16x128xf32, #tpu.memory_space<vmem>>) attributes {dimension_semantics = [#tpu.dimension_semantics<parallel>], iteration_bounds = array<i64: 1>, scalar_prefetch = 0 : i64, scratch_operands = 0 : i64, tpu.core_type = #tpu.core_type<tc>, window_params = [{transform_indices = @transform_0, window_bounds = array<i64: 16, 32>}, {pipeline_mode = #tpu.pipeline_mode<synchronous>, transform_indices = @transform_1, window_bounds = array<i64: 1, 32>}, {pipeline_mode = #tpu.pipeline_mode<synchronous>, transform_indices = @transform_2, window_bounds = array<i64: 1, 32>}, {pipeline_mode = #tpu.pipeline_mode<synchronous>, transform_indices = @transform_3, window_bounds = array<i64: 32, 128>}, {pipeline_mode = #tpu.pipeline_mode<synchronous>, transform_indices = @transform_4, window_bounds = array<i64: 1, 128>}, {transform_indices = @transform_5, window_bounds = array<i64: 16, 128>}]} {
    %c0 = arith.constant 0 : index
    %c0_0 = arith.constant 0 : index
    %0 = vector.load %arg1[%c0, %c0_0] : memref<16x32xf32, #tpu.memory_space<vmem>>, vector<16x32xf32>
    %cst = arith.constant dense<0.000000e+00> : vector<16xf32>
    %1 = vector.multi_reduction <add>, %0, %cst [1] : vector<16x32xf32> to vector<16xf32>
    %2 = vector.shape_cast %1 : vector<16xf32> to vector<16x1xf32>
    %cst_1 = arith.constant 3.200000e+01 : f32
    %3 = vector.broadcast %cst_1 : f32 to vector<16x1xf32>
    %4 = arith.divf %2, %3 : vector<16x1xf32>
    %5 = vector.broadcast %4 : vector<16x1xf32> to vector<16x32xf32>
    %6 = arith.subf %0, %5 : vector<16x32xf32>
    %7 = arith.mulf %6, %6 : vector<16x32xf32>
    %cst_2 = arith.constant dense<0.000000e+00> : vector<16xf32>
    %8 = vector.multi_reduction <add>, %7, %cst_2 [1] : vector<16x32xf32> to vector<16xf32>
    %9 = vector.shape_cast %8 : vector<16xf32> to vector<16x1xf32>
    %cst_3 = arith.constant 3.200000e+01 : f32
    %10 = vector.broadcast %cst_3 : f32 to vector<16x1xf32>
    %11 = arith.divf %9, %10 : vector<16x1xf32>
    %cst_4 = arith.constant 9.99999974E-6 : f32
    %12 = vector.broadcast %cst_4 : f32 to vector<16x1xf32>
    %13 = arith.addf %11, %12 : vector<16x1xf32>
    %14 = math.rsqrt %13 : vector<16x1xf32>
    %15 = vector.broadcast %14 : vector<16x1xf32> to vector<16x32xf32>
    %16 = arith.mulf %6, %15 : vector<16x32xf32>
    %c0_5 = arith.constant 0 : index
    %c0_6 = arith.constant 0 : index
    %17 = vector.load %arg2[%c0_5, %c0_6] : memref<1x32xf32, #tpu.memory_space<vmem>>, vector<1x32xf32>
    %18 = vector.broadcast %17 : vector<1x32xf32> to vector<16x32xf32>
    %19 = arith.mulf %16, %18 : vector<16x32xf32>
    %c0_7 = arith.constant 0 : index
    %c0_8 = arith.constant 0 : index
    %20 = vector.load %arg3[%c0_7, %c0_8] : memref<1x32xf32, #tpu.memory_space<vmem>>, vector<1x32xf32>
    %21 = vector.broadcast %20 : vector<1x32xf32> to vector<16x32xf32>
    %22 = arith.addf %19, %21 : vector<16x32xf32>
    %c0_9 = arith.constant 0 : index
    %c0_10 = arith.constant 0 : index
    %23 = vector.load %arg4[%c0_9, %c0_10] : memref<32x128xf32, #tpu.memory_space<vmem>>, vector<32x128xf32>
    %cst_11 = arith.constant dense<0.000000e+00> : vector<16x128xf32>
    %24 = tpu.matmul %22, %23, %cst_11 {dimension_numbers = #tpu.dot_dimension_numbers<[1], [0], [0], [1], [0, 0, 1, 1], [], []>} : vector<16x32xf32>, vector<32x128xf32>, vector<16x128xf32> -> vector<16x128xf32>
    %c0_12 = arith.constant 0 : index
    %c0_13 = arith.constant 0 : index
    %25 = vector.load %arg5[%c0_12, %c0_13] : memref<1x128xf32, #tpu.memory_space<vmem>>, vector<1x128xf32>
    %26 = vector.broadcast %25 : vector<1x128xf32> to vector<16x128xf32>
    %27 = arith.addf %24, %26 : vector<16x128xf32>
    %cst_14 = arith.constant dense<0xFF800000> : vector<16xf32>
    %28 = vector.multi_reduction <maximumf>, %27, %cst_14 [1] : vector<16x128xf32> to vector<16xf32>
    %29 = vector.shape_cast %28 : vector<16xf32> to vector<16x1xf32>
    %30 = vector.broadcast %29 : vector<16x1xf32> to vector<16x128xf32>
    %31 = arith.subf %27, %30 : vector<16x128xf32>
    %32 = math.exp %31 : vector<16x128xf32>
    %cst_15 = arith.constant dense<0.000000e+00> : vector<16xf32>
    %33 = vector.multi_reduction <add>, %32, %cst_15 [1] : vector<16x128xf32> to vector<16xf32>
    %34 = vector.shape_cast %33 : vector<16xf32> to vector<16x1xf32>
    %35 = tpu.reciprocal %34 {approx = true} : vector<16x1xf32> -> vector<16x1xf32>
    %36 = arith.mulf %34, %35 : vector<16x1xf32>
    %cst_16 = arith.constant 2.000000e+00 : f32
    %37 = vector.broadcast %cst_16 : f32 to vector<16x1xf32>
    %38 = arith.subf %37, %36 : vector<16x1xf32>
    %39 = arith.mulf %35, %38 : vector<16x1xf32>
    %40 = vector.broadcast %39 : vector<16x1xf32> to vector<16x128xf32>
    %41 = arith.mulf %32, %40 : vector<16x128xf32>
    %c0_17 = arith.constant 0 : index
    %c0_18 = arith.constant 0 : index
    %42 = vector.load %arg6[%c0_17, %c0_18] : memref<16x128xf32, #tpu.memory_space<vmem>>, vector<16x128xf32>
    tpu.vector_store %arg6[%c0_17, %c0_18], %41 {strides = array<i32>} : memref<16x128xf32, #tpu.memory_space<vmem>>, vector<16x128xf32>,
    return
  }
  func.func @transform_0(%arg0: i32) -> (i32, i32) {
    %c0_i32 = arith.constant 0 : i32
    %c0_i32_0 = arith.constant 0 : i32
    return %arg0, %c0_i32 : i32, i32
  }
  func.func @transform_1(%arg0: i32) -> (i32, i32) {
    %c0_i32 = arith.constant 0 : i32
    %c0_i32_0 = arith.constant 0 : i32
    %c0_i32_1 = arith.constant 0 : i32
    return %c0_i32, %c0_i32_0 : i32, i32
  }
  func.func @transform_2(%arg0: i32) -> (i32, i32) {
    %c0_i32 = arith.constant 0 : i32
    %c0_i32_0 = arith.constant 0 : i32
    %c0_i32_1 = arith.constant 0 : i32
    return %c0_i32, %c0_i32_0 : i32, i32
  }
  func.func @transform_3(%arg0: i32) -> (i32, i32) {
    %c0_i32 = arith.constant 0 : i32
    %c0_i32_0 = arith.constant 0 : i32
    %c0_i32_1 = arith.constant 0 : i32
    return %c0_i32, %c0_i32_0 : i32, i32
  }
  func.func @transform_4(%arg0: i32) -> (i32, i32) {
    %c0_i32 = arith.constant 0 : i32
    %c0_i32_0 = arith.constant 0 : i32
    %c0_i32_1 = arith.constant 0 : i32
    return %c0_i32, %c0_i32_0 : i32, i32
  }
  func.func @transform_5(%arg0: i32) -> (i32, i32) {
    %c0_i32 = arith.constant 0 : i32
    %c0_i32_0 = arith.constant 0 : i32
    return %arg0, %c0_i32 : i32, i32
  }
}

</mosaic_0001>

<llo_original>
// kernel: tpu_custom_call.1
$region0: #{tpu_custom_call.1}
  #allocation0 [shape = 'u32[]', space=smem, size = 0x4, offset = 0x4, fixed_abs, tag = 'smem constant byte address 0x4 - core index']
  #allocation1 [shape = 'u32[144,128]{1,0:T(1,128)}', space=vmem, size = 0x12000, scoped, tag = 'internal scratch']
  %s0 = inlined_call_operand.hbm [shape: f32[16,32], index: 0, kind: input, shape index: {}]
  %s1 = inlined_call_operand.vmem [shape: f32[1,32], index: 1, kind: input, shape index: {}]
  %s2 = inlined_call_operand.vmem [shape: f32[1,32], index: 2, kind: input, shape index: {}]
  %s3 = inlined_call_operand.hbm [shape: f32[32,128], index: 3, kind: input, shape index: {}]
  %s4 = inlined_call_operand.vmem [shape: f32[1,128], index: 4, kind: input, shape index: {}]
  %s5 = inlined_call_operand.hbm [shape: f32[16,128], index: 5, kind: output, shape index: {}]
  %s6 = sld [smem:[#allocation0]]
  $region38: #{tpu_custom_call.1} parent=0
    _
  %s8 = ssub.s32 1, %s6
  %s9 = scalar_select 0, %s8, %s6
  $region1: #{tpu_custom_call.1} parent=0
    #allocation2 [shape = 'u8[8192]{0}', space=vmem, size = 0x2000, scoped, tag = 'input window, operand 0, single buffered']
    #allocation3 [shape = 's32[1]{0}', space=sflag, size = 0x4, scoped, tag = 'scoped memory for tpu_custom_call.1']
    #allocation4 [shape = 's32[1]{0}', space=sflag, size = 0x4, scoped, tag = 'scoped memory for tpu_custom_call.1']
    #allocation5 [shape = 'u8[16384]{0}', space=vmem, size = 0x4000, scoped, tag = 'input window, operand 3, single buffered']
    #allocation6 [shape = 's32[1]{0}', space=sflag, size = 0x4, scoped, tag = 'scoped memory for tpu_custom_call.1']
    #allocation7 [shape = 'u8[8192]{0}', space=vmem, size = 0x2000, scoped, tag = 'output window, operand 0, single buffered']
    %10 = vsyncpa [#allocation3], 0
    %11 = vsyncpa [#allocation6], 0
    %12 = vsyncpa [#allocation4], 0
    // Predicated region
    $region2: #{tpu_custom_call.1} parent=1 // pred_check
      _
    $region3: #{tpu_custom_call.1} parent=1 // pred_check_branch
      %14 = sbr.rel (0) target = $region5
    $region4: #{tpu_custom_call.1} parent=1 // pred_region
      %s16 = ssub.s32 256, 256
      %17 = vsyncadd [#allocation3], %s16
      %s18 = sshll.u32 [#allocation2], 4
      %s19 = int_to_ptr.vmem [resolvable:$true] %s18
      %24 = dma.hbm_to_vmem [thread:$0]  %s0, 256, %s19, [#allocation3], 128, 128, 8
    $region5: #{tpu_custom_call.1} parent=1 // pred_fallthru
      _
    // Predicated region
    $region6: #{tpu_custom_call.1} parent=1 // pred_check
      _
    $region7: #{tpu_custom_call.1} parent=1 // pred_check_branch
      %26 = sbr.rel (0) target = $region9
    $region8: #{tpu_custom_call.1} parent=1 // pred_region
      _
    $region9: #{tpu_custom_call.1} parent=1 // pred_fallthru
      _
    // Predicated region
    $region10: #{tpu_custom_call.1} parent=1 // pred_check
      _
    $region11: #{tpu_custom_call.1} parent=1 // pred_check_branch
      %28 = sbr.rel (0) target = $region13
    $region12: #{tpu_custom_call.1} parent=1 // pred_region
      _
    $region13: #{tpu_custom_call.1} parent=1 // pred_fallthru
      _
    // Predicated region
    $region14: #{tpu_custom_call.1} parent=1 // pred_check
      _
    $region15: #{tpu_custom_call.1} parent=1 // pred_check_branch
      %30 = sbr.rel (0) target = $region17
    $region16: #{tpu_custom_call.1} parent=1 // pred_region
      %s32 = ssub.s32 512, 512
      %33 = vsyncadd [#allocation6], %s32
      %s34 = sshll.u32 [#allocation5], 4
      %s35 = int_to_ptr.vmem [resolvable:$true] %s34
      %40 = dma.hbm_to_vmem [thread:$0]  %s3, 512, %s35, [#allocation6], 128, 128, 8
    $region17: #{tpu_custom_call.1} parent=1 // pred_fallthru
      _
    // Predicated region
    $region18: #{tpu_custom_call.1} parent=1 // pred_check
      _
    $region19: #{tpu_custom_call.1} parent=1 // pred_check_branch
      %42 = sbr.rel (0) target = $region21
    $region20: #{tpu_custom_call.1} parent=1 // pred_region
      _
    $region21: #{tpu_custom_call.1} parent=1 // pred_fallthru
      _
    // Predicated region
    $region22: #{tpu_custom_call.1} parent=1 // pred_check
      _
    $region23: #{tpu_custom_call.1} parent=1 // pred_check_branch
      %44 = sbr.rel (0) target = $region25
    $region24: #{tpu_custom_call.1} parent=1 // pred_region
      %45 = dma.done [#allocation3], 256
    $region25: #{tpu_custom_call.1} parent=1 // pred_fallthru
      _
    // Predicated region
    $region26: #{tpu_custom_call.1} parent=1 // pred_check
      _
    $region27: #{tpu_custom_call.1} parent=1 // pred_check_branch
      %47 = sbr.rel (0) target = $region29
    $region28: #{tpu_custom_call.1} parent=1 // pred_region
      %48 = dma.done [#allocation6], 512
    $region29: #{tpu_custom_call.1} parent=1 // pred_fallthru
      _
    %v49 = vld [vmem:[#allocation2] sm:$0xff]
    %v50 = vld [vmem:[#allocation2 + $0x8] sm:$0xff]
    %vm51 = vcmask 261120
    %v52 = vsel %vm51, %v49, 0.0
    %53 = vadd.xlane.f32.xlu0 %v52
    %v54 = vpop.xlane.xlu0 %53
    %v55 = vsel %vm51, %v50, 0.0
    %56 = vadd.xlane.f32.xlu0 %v55
    %v57 = vpop.xlane.xlu0 %56
    %v58 = vrcp.pop 32.0
    %v59 = vmul.f32 %v54, %v58
    %v60 = vmul.f32 %v57, %v58
    %v61 = vsub.f32 %v49, %v59
    %v62 = vsub.f32 %v50, %v60
    %v63 = vmul.f32 %v61, %v61
    %v64 = vmul.f32 %v62, %v62
    %v65 = vsel %vm51, %v63, 0.0
    %66 = vadd.xlane.f32.xlu0 %v65
    %v67 = vpop.xlane.xlu0 %66
    %v68 = vsel %vm51, %v64, 0.0
    %69 = vadd.xlane.f32.xlu0 %v68
    %v70 = vpop.xlane.xlu0 %69
    %v71 = vmul.f32 %v67, %v58
    %v72 = vmul.f32 %v70, %v58
    %v73 = vadd.f32 %v71, 1e-05
    %v74 = vadd.f32 %v72, 1e-05
    %v75 = vrsqrt.pop %v73
    %v76 = vrsqrt.pop %v74
    %v77 = vmul.f32 %v61, %v75
    %v78 = vmul.f32 %v62, %v76
    %v79 = vld [vmem:[%s1] sm:$0x1]
    %v81 = vlaneseq
    %v82 = vshrl.u32 %v81, 7
    %v83 = vsub.s32 0, %v82
    %v84 = vrot.slane %v79, %v83
    %v86 = vmul.f32 %v77, %v84
    %v87 = vmul.f32 %v78, %v84
    %v88 = vld [vmem:[%s2] sm:$0x1]
    %v90 = vlaneseq
    %v91 = vshrl.u32 %v90, 7
    %v92 = vsub.s32 0, %v91
    %v93 = vrot.slane %v88, %v92
    %v95 = vadd.f32 %v86, %v93
    %v96 = vadd.f32 %v87, %v93
    %v97 = vld [vmem:[#allocation5] sm:$0xff]
    %v98 = vld [vmem:[#allocation5 + $0x8] sm:$0xff]
    %v99 = vld [vmem:[#allocation5 + $0x10] sm:$0xff]
    %v100 = vld [vmem:[#allocation5 + $0x18] sm:$0xff]
    %v101 = vld [vmem:[%s4] sm:$0x1]
    %v103 = vlaneseq
    %v104 = vshrl.u32 %v103, 7
    %v105 = vsub.s32 0, %v104
    %v106 = vrot.slane %v101, %v105
    %v109 = vsel %vm51, %v95, 0
    %v112 = vsel %vm51, %v96, 0
    %114 = vmatprep.subr.mxu0 0.0
    %115 = vmatpush1.msra.mxu0 0.0
    %116 = vmatprep.subr.mxu0 0.0
    %117 = vmatpush1.msra.mxu0 0.0
    %118 = vmatprep.subr.mxu0 0.0
    %119 = vmatpush1.msra.mxu0 0.0
    %120 = vmatprep.subr.mxu0 0.0
    %121 = vmatpush1.msra.mxu0 0.0
    %122 = vmatprep.subr.mxu0 0.0
    %123 = vmatpush1.msra.mxu0 0.0
    %124 = vmatprep.subr.mxu0 0.0
    %125 = vmatpush1.msra.mxu0 0.0
    %126 = vmatprep.subr.mxu0 0.0
    %127 = vmatpush1.msra.mxu0 0.0
    %128 = vmatprep.subr.mxu0 0.0
    %129 = vmatpush1.msra.mxu0 0.0
    %130 = vmatprep.subr.mxu0 0.0
    %131 = vmatpush1.msra.mxu0 0.0
    %132 = vmatprep.subr.mxu0 0.0
    %133 = vmatpush1.msra.mxu0 0.0
    %134 = vmatprep.subr.mxu0 0.0
    %135 = vmatpush1.msra.mxu0 0.0
    %136 = vmatprep.subr.mxu0 0.0
    %137 = vmatpush1.msra.mxu0 0.0
    %138 = vmatprep.subr.mxu0 0.0
    %139 = vmatpush1.msra.mxu0 %v100
    %140 = vmatprep.subr.mxu0 0.0
    %141 = vmatpush1.msra.mxu0 %v99
    %142 = vmatprep.subr.mxu0 0.0
    %143 = vmatpush1.msra.mxu0 %v98
    %144 = vmatprep.subr.mxu0 0.0
    %145 = vmatpush1.msra.mxu0 %v97
    %146 = vmatprep.subr.mxu0 0.0
    %147 = vmatpush2.msra.mxu0 0.0
    %148 = vmatprep.subr.mxu0 0.0
    %149 = vmatpush2.msra.mxu0 0.0
    %150 = vmatprep.subr.mxu0 0.0
    %151 = vmatpush2.msra.mxu0 0.0
    %152 = vmatprep.subr.mxu0 0.0
    %153 = vmatpush2.msra.mxu0 0.0
    %154 = vmatprep.subr.mxu0 0.0
    %155 = vmatpush2.msra.mxu0 0.0
    %156 = vmatprep.subr.mxu0 0.0
    %157 = vmatpush2.msra.mxu0 0.0
    %158 = vmatprep.subr.mxu0 0.0
    %159 = vmatpush2.msra.mxu0 0.0
    %160 = vmatprep.subr.mxu0 0.0
    %161 = vmatpush2.msra.mxu0 0.0
    %162 = vmatprep.subr.mxu0 0.0
    %163 = vmatpush2.msra.mxu0 0.0
    %164 = vmatprep.subr.mxu0 0.0
    %165 = vmatpush2.msra.mxu0 0.0
    %166 = vmatprep.subr.mxu0 0.0
    %167 = vmatpush2.msra.mxu0 0.0
    %168 = vmatprep.subr.mxu0 0.0
    %169 = vmatpush2.msra.mxu0 0.0
    %170 = vmatprep.subr.mxu0 0.0
    %171 = vmatpush2.msra.mxu0 0.0
    %172 = vmatprep.subr.mxu0 0.0
    %173 = vmatpush2.msra.mxu0 0.0
    %174 = vmatprep.subr.mxu0 0.0
    %175 = vmatpush2.msra.mxu0 0.0
    %176 = vmatprep.subr.mxu0 0.0
    %177 = vmatpush2.msra.mxu0 0.0
    %178 = vmatprep.mubr.f32.mxu0 0.0
    %179 = vmatmul.mubr.f32.gmra.mxu0 %v109
    %v180 = vpop.f32.mrf.mxu0
    %v181 = vadd.f32 %v106, %v180
    %v182 = vpop.f32.mrf.mxu0
    %183 = vmatprep.mubr.f32.mxu0 0.0
    %184 = vmatmul.mubr.f32.gmra.mxu0 %v112
    %v185 = vpop.f32.mrf.mxu0
    %v186 = vadd.f32 %v106, %v185
    %v187 = vpop.f32.mrf.mxu0
    %188 = vdwg.mxu0
    %189 = vmax.xlane.f32.xlu0 %v181
    %v190 = vpop.xlane.xlu0 %189
    %191 = vmax.xlane.f32.xlu0 %v186
    %v192 = vpop.xlane.xlu0 %191
    %v193 = vsub.f32 %v181, %v190
    %v194 = vsub.f32 %v186, %v192
    %v195 = vmul.f32 %v193, 1.442695
    %v196 = vpow.pop %v195
    %v197 = vmul.f32 %v194, 1.442695
    %v198 = vpow.pop %v197
    %199 = vadd.xlane.f32.xlu0 %v196
    %v200 = vpop.xlane.xlu0 %199
    %201 = vadd.xlane.f32.xlu0 %v198
    %v202 = vpop.xlane.xlu0 %201
    %v203 = vrcp.pop %v200
    %v204 = vrcp.pop %v202
    %v205 = vmul.f32 %v200, %v203
    %v206 = vmul.f32 %v202, %v204
    %v207 = vsub.f32 2.0, %v205
    %v208 = vsub.f32 2.0, %v206
    %v209 = vmul.f32 %v203, %v207
    %v210 = vmul.f32 %v204, %v208
    %v211 = vmul.f32 %v196, %v209
    %v212 = vmul.f32 %v198, %v210
    %213 = vst [vmem:[#allocation7] sm:$0xff] %v211
    %214 = vst [vmem:[#allocation7 + $0x8] sm:$0xff] %v212
    // Predicated region
    $region30: #{tpu_custom_call.1} parent=1 // pred_check
      _
    $region31: #{tpu_custom_call.1} parent=1 // pred_check_branch
      %216 = sbr.rel (0) target = $region33
    $region32: #{tpu_custom_call.1} parent=1 // pred_region
      %s218 = ssub.s32 256, 256
      %219 = vsyncadd [#allocation4], %s218
      %s220 = sshll.u32 [#allocation7], 4
      %s221 = int_to_ptr.vmem [resolvable:$true] %s220
      %226 = dma.vmem_to_hbm [thread:$0]  %s221, 256, %s5, [#allocation4], 128, 128, 8
    $region33: #{tpu_custom_call.1} parent=1 // pred_fallthru
      _
    // Predicated region
    $region34: #{tpu_custom_call.1} parent=1 // pred_check
      _
    $region35: #{tpu_custom_call.1} parent=1 // pred_check_branch
      %228 = sbr.rel (0) target = $region37
    $region36: #{tpu_custom_call.1} parent=1 // pred_region
      %229 = dma.done [#allocation4], 256
    $region37: #{tpu_custom_call.1} parent=1 // pred_fallthru
      _
    %230 = vsyncpa [#allocation3], 1
    %231 = vsyncpa [#allocation6], 1
    %232 = vsyncpa [#allocation4], 1

</llo_original>
